<compile_context>
chip_gen: v5e
topology: v5e:2x2
jax: 0.10.0
libtpu: 0.0.40
codegen_flags: <defaults>
</compile_context>

<pallas_src>
import jax
import jax.numpy as jnp
from jax.experimental import pallas as pl
from jax.experimental.pallas import tpu as pltpu

_BN_EPS = 1e-5


def _round_up(a, b):
    return (a + b - 1) // b * b


def _pick_tile(total, cap, unit):
    """Largest tile <= cap (multiple of `unit`) that divides `total`."""
    if total <= cap:
        return total
    t = (cap // unit) * unit
    while t > unit:
        if total % t == 0:
            return t
        t -= unit
    return unit


# ---------------------------------------------------------------------------
# Fused matmul + folded-BN(scale/shift) + optional residual + optional ReLU
# ---------------------------------------------------------------------------
def _matmul_bn_act(x, w, scale, shift, residual=None, relu=False,
                   out_dtype=jnp.float32):
    """out = act((x @ w) * scale + shift (+ residual)).

    x: (M, K) any float; w: (K, N) bf16 (pre-packed); scale/shift: (N,) f32;
    residual: (M, N) or None.  bf16 operands, f32 accumulation on the MXU.
    """
    M, K = x.shape
    Kw, N = w.shape
    assert K == Kw, (K, Kw)
    x = x.astype(jnp.bfloat16)                    # single cast, outside kernel
    w = w.astype(jnp.bfloat16)

    # ---- tiling -----------------------------------------------------------
    Mp = _round_up(M, 8)
    tm = _pick_tile(Mp, 256, 8)
    Np = _round_up(N, 128)
    TK_FULL = 2048                                # full-K single step when it fits
    if K <= TK_FULL:
        Kp, tk = K, K
    else:
        Kp = _round_up(K, 512)
        tk = _pick_tile(Kp, TK_FULL, 512)
    single_k = (tk == Kp)
    tn_cap = 1024 if tm <= 64 else 512            # wide lane-dense N tiles
    tn = _pick_tile(Np, tn_cap, 128)
    # keep >=2 blocks on a parallel axis so both v7x TensorCores get work
    if (Mp // tm) * (Np // tn) == 1:
        if Np >= 256:
            tn = 128
        elif Mp >= 16:
            half = (Mp // 2) // 8 * 8
            tm = half if (half > 0 and Mp % half == 0) else 8

    # ---- pad operands (weights/scale/shift already padded at init) ---------
    if (Mp, Kp) != (M, K):
        x = jnp.pad(x, ((0, Mp - M), (0, Kp - K)))
    if (Kp, Np) != (Kw, N):
        w = jnp.pad(w, ((0, Kp - Kw), (0, Np - N)))
    if scale.shape[0] != Np:
        scale = jnp.pad(scale, (0, Np - scale.shape[0]))
        shift = jnp.pad(shift, (0, Np - shift.shape[0]))
    s2 = scale.reshape(1, Np).astype(jnp.float32)
    b2 = shift.reshape(1, Np).astype(jnp.float32)

    has_res = residual is not None
    ops = [x, w, s2, b2]
    if has_res:
        r = residual
        if r.shape != (Mp, Np):
            r = jnp.pad(r, ((0, Mp - r.shape[0]), (0, Np - r.shape[1])))
        ops.append(r)

    out_isize = jnp.dtype(out_dtype).itemsize
    cost = pl.CostEstimate(
        flops=2 * Mp * Kp * Np,
        transcendentals=0,
        bytes_accessed=int(Mp * Kp * 2 + Kp * Np * 2 + Mp * Np * out_isize
                           + (Mp * Np * 2 if has_res else 0) + 2 * Np * 4),
    )

    if single_k:
        # Full-K in one step: no accumulator scratch, epilogue fused in place.
        def kernel(*refs):
            if has_res:
                x_ref, w_ref, s_ref, b_ref, r_ref, o_ref = refs
            else:
                x_ref, w_ref, s_ref, b_ref, o_ref = refs
            y = jnp.dot(x_ref[...], w_ref[...],
                        preferred_element_type=jnp.float32)
            y = y * s_ref[...] + b_ref[...]
            if has_res:
                y = y + r_ref[...].astype(jnp.float32)
            if relu:
                y = jnp.maximum(y, 0.0)
            o_ref[...] = y.astype(o_ref.dtype)

        grid = (Mp // tm, Np // tn)
        in_specs = [
            pl.BlockSpec((tm, tk), lambda i, j: (i, 0)),
            pl.BlockSpec((tk, tn), lambda i, j: (0, j)),
            pl.BlockSpec((1, tn), lambda i, j: (0, j)),
            pl.BlockSpec((1, tn), lambda i, j: (0, j)),
        ]
        if has_res:
            in_specs.append(pl.BlockSpec((tm, tn), lambda i, j: (i, j)))
        out_spec = pl.BlockSpec((tm, tn), lambda i, j: (i, j))
        scratch = []
        sem = ("parallel", "parallel")
    else:
        def kernel(*refs):
            if has_res:
                x_ref, w_ref, s_ref, b_ref, r_ref, o_ref, acc_ref = refs
            else:
                x_ref, w_ref, s_ref, b_ref, o_ref, acc_ref = refs
                r_ref = None
            kk = pl.program_id(2)

            @pl.when(kk == 0)
            def _():
                acc_ref[...] = jnp.zeros_like(acc_ref)

            acc_ref[...] += jnp.dot(x_ref[...], w_ref[...],
                                    preferred_element_type=jnp.float32)

            @pl.when(kk == pl.num_programs(2) - 1)
            def _():
                y = acc_ref[...] * s_ref[...] + b_ref[...]
                if r_ref is not None:
                    y = y + r_ref[...].astype(jnp.float32)
                if relu:
                    y = jnp.maximum(y, 0.0)
                o_ref[...] = y.astype(o_ref.dtype)

        grid = (Mp // tm, Np // tn, Kp // tk)
        in_specs = [
            pl.BlockSpec((tm, tk), lambda i, j, k: (i, k)),
            pl.BlockSpec((tk, tn), lambda i, j, k: (k, j)),
            pl.BlockSpec((1, tn), lambda i, j, k: (0, j)),
            pl.BlockSpec((1, tn), lambda i, j, k: (0, j)),
        ]
        if has_res:
            in_specs.append(pl.BlockSpec((tm, tn), lambda i, j, k: (i, j)))
        out_spec = pl.BlockSpec((tm, tn), lambda i, j, k: (i, j))
        scratch = [pltpu.VMEM((tm, tn), jnp.float32)]
        sem = ("parallel", "parallel", "arbitrary")

    out = pl.pallas_call(
        kernel,
        out_shape=jax.ShapeDtypeStruct((Mp, Np), out_dtype),
        grid_spec=pltpu.PrefetchScalarGridSpec(
            num_scalar_prefetch=0,
            grid=grid,
            in_specs=in_specs,
            out_specs=out_spec,
            scratch_shapes=scratch,
        ),
        compiler_params=pltpu.CompilerParams(
            dimension_semantics=sem,
            vmem_limit_bytes=32 * 1024 * 1024),
        cost_estimate=cost,
    )(*ops)
    if (Mp, Np) != (M, N):
        out = out[:M, :N]
    return out


# ---------------------------------------------------------------------------
# Conv wrappers (all channel dims are pre-padded to multiples of 128)
# ---------------------------------------------------------------------------
def _conv1x1_bn_act(x, p, stride=1, relu=False, residual=None,
                    out_dtype=jnp.bfloat16):
    """1x1 Conv + folded BN (+ residual) (+ ReLU) as one fused matmul."""
    if stride != 1:
        x = x[:, ::stride, ::stride, :]
    N, H, W, C = x.shape
    M = N * H * W
    x2d = x.reshape(M, C)                       # free reshape (NHWC contiguous)
    res2d = None
    if residual is not None:
        Np = p['w'].shape[-1]
        assert residual.shape == (N, H, W, Np), (residual.shape, (N, H, W, Np))
        res2d = residual.reshape(M, Np)
    y2d = _matmul_bn_act(x2d, p['w'], p['scale'], p['shift'],
                         residual=res2d, relu=relu, out_dtype=out_dtype)
    return y2d.reshape(N, H, W, -1)


def _conv3x3_s1_fused(x, p, relu=True, out_dtype=jnp.bfloat16):
    """Stride-1 3x3 Conv + BN (+ReLU): the 9 taps are streamed in-kernel from
    the VMEM-resident padded activation (no HBM im2col materialization)."""
    N, H, W, C = x.shape
    wp = p['w']                                  # (3, 3, C, Np) bf16
    Np = wp.shape[-1]
    Ho, Wo = H, W
    Mrows = Ho * Wo
    xp = jnp.pad(x, ((0, 0), (1, 1), (1, 1), (0, 0))).astype(jnp.bfloat16)
    Hp, Wpad = H + 2, W + 2
    tn = _pick_tile(Np, 256, 128)
    s2 = p['scale'].reshape(1, Np).astype(jnp.float32)
    b2 = p['shift'].reshape(1, Np).astype(jnp.float32)

    def kernel(x_ref, w_ref, s_ref, b_ref, o_ref):
        acc = jnp.zeros((Mrows, tn), jnp.float32)
        for dy in range(3):                      # unrolled 9-tap accumulation
            for dx in range(3):
                win = x_ref[0, dy:dy + Ho, dx:dx + Wo, :].reshape(Mrows, C)
                acc = acc + jnp.dot(win, w_ref[dy, dx],
                                    preferred_element_type=jnp.float32)
        y = acc * s_ref[...] + b_ref[...]
        if relu:
            y = jnp.maximum(y, 0.0)
        o_ref[0] = y.astype(o_ref.dtype)

    cost = pl.CostEstimate(
        flops=2 * N * Mrows * 9 * C * Np,
        transcendentals=0,
        bytes_accessed=int(N * Hp * Wpad * C * 2 * (Np // tn)
                           + 9 * C * Np * 2
                           + N * Mrows * Np * jnp.dtype(out_dtype).itemsize),
    )

    out = pl.pallas_call(
        kernel,
        out_shape=jax.ShapeDtypeStruct((N, Mrows, Np), out_dtype),
        grid_spec=pltpu.PrefetchScalarGridSpec(
            num_scalar_prefetch=0,
            grid=(N, Np // tn),
            in_specs=[
                pl.BlockSpec((1, Hp, Wpad, C), lambda b, j: (b, 0, 0, 0)),
                pl.BlockSpec((3, 3, C, tn), lambda b, j: (0, 0, 0, j)),
                pl.BlockSpec((1, tn), lambda b, j: (0, j)),
                pl.BlockSpec((1, tn), lambda b, j: (0, j)),
            ],
            out_specs=pl.BlockSpec((1, Mrows, tn), lambda b, j: (b, 0, j)),
        ),
        compiler_params=pltpu.CompilerParams(
            dimension_semantics=("parallel", "parallel"),
            vmem_limit_bytes=32 * 1024 * 1024),
        cost_estimate=cost,
    )(xp, wp, s2, b2)
    return out.reshape(N, Ho, Wo, Np)


def _conv3x3_im2col(x, p, stride, relu=True, out_dtype=jnp.bfloat16):
    """General 3x3 Conv + BN (+ReLU) via im2col + fused matmul (strided case)."""
    N, H, W, C = x.shape
    wp = p['w']                                  # (3, 3, C, Np)
    Np = wp.shape[-1]
    xpad = jnp.pad(x, ((0, 0), (1, 1), (1, 1), (0, 0)))
    Ho = (H + 2 - 3) // stride + 1
    Wo = (W + 2 - 3) // stride + 1
    taps = []
    for dy in range(3):
        for dx in range(3):
            taps.append(xpad[:, dy:dy + stride * Ho:stride,
                             dx:dx + stride * Wo:stride, :])
    pats = jnp.stack(taps, axis=3)               # (N, Ho, Wo, 9, C)
    x2d = pats.reshape(N * Ho * Wo, 9 * C)
    w2d = wp.reshape(9 * C, Np)
    y2d = _matmul_bn_act(x2d, w2d, p['scale'], p['shift'],
                         relu=relu, out_dtype=out_dtype)
    return y2d.reshape(N, Ho, Wo, Np)


def _conv3x3_bn_act(x, p, stride=1, relu=True, out_dtype=jnp.bfloat16):
    N, H, W, C = x.shape
    fits_vmem = (H + 2) * (W + 2) * C * 2 <= 2 * 1024 * 1024
    # TODO(synk): very large feature maps would need output-row tiling in the
    # fused kernel; they currently take the im2col fallback path.
    if stride == 1 and C % 128 == 0 and W % 8 == 0 and fits_vmem:
        return _conv3x3_s1_fused(x, p, relu=relu, out_dtype=out_dtype)
    return _conv3x3_im2col(x, p, stride=stride, relu=relu, out_dtype=out_dtype)


# ---------------------------------------------------------------------------
# Parameter init: Conv + BN folded, padded & packed (bf16) once at init
# ---------------------------------------------------------------------------
def _init_conv_bn_packed(key, ksize, cin_true, cin_stored, cout):
    ks = jax.random.split(key, 5)
    fan_in = float(cin_true * ksize * ksize)
    w = jax.random.normal(ks[0], (ksize, ksize, cin_true, cout),
                          jnp.float32) / (fan_in ** 0.5)
    b = 0.01 * jax.random.normal(ks[1], (cout,), jnp.float32)   # Conv2d bias=True
    gamma = 1.0 + 0.1 * jax.random.normal(ks[2], (cout,), jnp.float32)
    beta = 0.1 * jax.random.normal(ks[3], (cout,), jnp.float32)
    mean = 0.05 * jax.random.normal(ks[4], (cout,), jnp.float32)
    var = jnp.ones((cout,), jnp.float32)

    # TODO(synk): BatchNorm2d folded with inference (running) statistics;
    # training-mode batch-stat computation is not implemented.
    scale = gamma / jnp.sqrt(var + _BN_EPS)
    shift = beta + (b - mean) * scale

    n_p = _round_up(cout, 128)
    w_p = jnp.zeros((ksize, ksize, cin_stored, n_p), jnp.float32)
    w_p = w_p.at[:, :, :cin_true, :cout].set(w).astype(jnp.bfloat16)
    if ksize == 1:
        w_p = w_p.reshape(cin_stored, n_p)
    scale_p = jnp.zeros((n_p,), jnp.float32).at[:cout].set(scale)
    shift_p = jnp.zeros((n_p,), jnp.float32).at[:cout].set(shift)
    return dict(w=w_p, scale=scale_p, shift=shift_p, cout=cout)


def init_bottleneck_block(key, n_inCh, n_outCh, stride=1, exp_coeff=4):
    cin_stored = _round_up(n_inCh, 128)
    mid_stored = _round_up(n_outCh, 128)
    k1, k2, k3, k4 = jax.random.split(key, 4)
    params = {
        'c1': _init_conv_bn_packed(k1, 1, n_inCh, cin_stored, n_outCh),
        'c2': _init_conv_bn_packed(k2, 3, n_outCh, mid_stored, n_outCh),
        'c3': _init_conv_bn_packed(k3, 1, n_outCh, mid_stored,
                                   n_outCh * exp_coeff),
        'stride': stride,
        'in_channels': n_inCh,
        'out_channels': n_outCh * exp_coeff,
    }
    # ds_layer as used by ResNet callers: 1x1 conv (stride) + BN when the
    # residual changes shape; None otherwise (identity residual).
    if stride != 1 or n_inCh != n_outCh * exp_coeff:
        params['ds'] = _init_conv_bn_packed(k4, 1, n_inCh, cin_stored,
                                            n_outCh * exp_coeff)
    else:
        params['ds'] = None
    return params


def bottleneck_block_forward(params, x):
    """x: (N, H, W, Cin) float32 NHWC  (PyTorch NCHW -> transpose(0, 2, 3, 1))."""
    cin_stored = params['c1']['w'].shape[0]
    if x.shape[-1] != cin_stored:               # pad lane dim once per call
        x = jnp.pad(x, ((0, 0), (0, 0), (0, 0),
                        (0, cin_stored - x.shape[-1])))
    stride = params['stride']

    y = _conv1x1_bn_act(x, params['c1'], relu=True, out_dtype=jnp.bfloat16)
    y = _conv3x3_bn_act(y, params['c2'], stride=stride, relu=True,
                        out_dtype=jnp.bfloat16)
    if params['ds'] is not None:
        res = _conv1x1_bn_act(x, params['ds'], stride=stride, relu=False,
                              out_dtype=jnp.bfloat16)
    else:
        res = x                                  # identity (x.clone() in torch)
    # c3 + BN, residual add and final ReLU fused into the kernel epilogue
    y = _conv1x1_bn_act(y, params['c3'], relu=True, residual=res,
                        out_dtype=jnp.float32)
    return y[..., :params['out_channels']]


# ---------------------------------------------------------------------------
# Plain-JAX reference (uses the same packed/folded params) for validation
# ---------------------------------------------------------------------------
def _ref_conv_bn(x, p, stride, padding, relu):
    w = p['w'].astype(jnp.float32)
    if w.ndim == 2:
        w = w.reshape(1, 1, w.shape[0], w.shape[1])
    y = jax.lax.conv_general_dilated(
        x.astype(jnp.float32), w,
        window_strides=(stride, stride),
        padding=[(padding, padding), (padding, padding)],
        dimension_numbers=('NHWC', 'HWIO', 'NHWC'))
    y = y * p['scale'] + p['shift']
    return jnp.maximum(y, 0.0) if relu else y


def _ref_forward(params, x):
    cin_stored = params['c1']['w'].shape[0]
    if x.shape[-1] != cin_stored:
        x = jnp.pad(x, ((0, 0), (0, 0), (0, 0),
                        (0, cin_stored - x.shape[-1])))
    s = params['stride']
    y = _ref_conv_bn(x, params['c1'], 1, 0, True)
    y = _ref_conv_bn(y, params['c2'], s, 1, True)
    if params['ds'] is not None:
        r = _ref_conv_bn(x, params['ds'], s, 0, False)
    else:
        r = x.astype(jnp.float32)
    y = _ref_conv_bn(y, params['c3'], 1, 0, False) + r
    y = jnp.maximum(y, 0.0)
    return y[..., :params['out_channels']]


def _check_close(got, ref, tag):
    scale = float(jnp.max(jnp.abs(ref))) + 1e-6
    err = float(jnp.max(jnp.abs(got.astype(jnp.float32) - ref)))
    assert err <= 0.05 * scale, (tag, err, scale)


if __name__ == "__main__":
    key = jax.random.PRNGKey(0)
    kp1, kx1, kp2, kx2, kp3, kx3 = jax.random.split(key, 6)

    # Case 1: stride=1 block with projection ds_layer (4 -> 8*4=32 channels).
    # NHWC (2, 16, 16, 4)  <->  PyTorch NCHW (2, 4, 16, 16).
    params1 = init_bottleneck_block(kp1, n_inCh=4, n_outCh=8, stride=1)
    x1 = jax.random.normal(kx1, (2, 16, 16, 4), jnp.float32)
    out1 = jax.block_until_ready(bottleneck_block_forward(params1, x1))
    assert out1.shape == (2, 16, 16, 32), out1.shape
    assert bool(jnp.all(jnp.isfinite(out1)))
    assert bool(jnp.all(out1 >= 0.0))
    _check_close(out1, _ref_forward(params1, x1), "stride1_ds")

    # Case 2: stride=2 block (strided 3x3 path + strided ds projection).
    params2 = init_bottleneck_block(kp2, n_inCh=32, n_outCh=8, stride=2)
    x2 = jax.random.normal(kx2, (2, 16, 16, 32), jnp.float32)
    out2 = jax.block_until_ready(bottleneck_block_forward(params2, x2))
    assert out2.shape == (2, 8, 8, 32), out2.shape
    assert bool(jnp.all(jnp.isfinite(out2)))
    _check_close(out2, _ref_forward(params2, x2), "stride2_ds")

    # Case 3: identity residual (ds_layer=None, n_inCh == n_outCh * exp_coeff).
    params3 = init_bottleneck_block(kp3, n_inCh=32, n_outCh=8, stride=1)
    x3 = jax.random.normal(kx3, (2, 16, 16, 32), jnp.float32)
    out3 = jax.block_until_ready(bottleneck_block_forward(params3, x3))
    assert out3.shape == (2, 16, 16, 32), out3.shape
    assert bool(jnp.all(jnp.isfinite(out3)))
    _check_close(out3, _ref_forward(params3, x3), "identity")

    print("KERNEL_OK")
</pallas_src>

<mosaic_0001>
module attributes {stable_mosaic.version = 11 : i64} {
  func.func @kernel(%arg0: i32, %arg1: i32, %arg2: memref<256x128xbf16, #tpu.memory_space<vmem>>, %arg3: memref<128x128xbf16, #tpu.memory_space<vmem>>, %arg4: memref<1x128xf32, #tpu.memory_space<vmem>>, %arg5: memref<1x128xf32, #tpu.memory_space<vmem>>, %arg6: memref<256x128xbf16, #tpu.memory_space<vmem>>) attributes {dimension_semantics = [#tpu.dimension_semantics<parallel>, #tpu.dimension_semantics<parallel>], iteration_bounds = array<i64: 2, 1>, scalar_prefetch = 0 : i64, scratch_operands = 0 : i64, tpu.core_type = #tpu.core_type<tc>, window_params = [{transform_indices = @transform_0, window_bounds = array<i64: 256, 128>}, {transform_indices = @transform_1, window_bounds = array<i64: 128, 128>}, {transform_indices = @transform_2, window_bounds = array<i64: 1, 128>}, {transform_indices = @transform_3, window_bounds = array<i64: 1, 128>}, {transform_indices = @transform_4, window_bounds = array<i64: 256, 128>}]} {
    %c0 = arith.constant 0 : index
    %c0_0 = arith.constant 0 : index
    %0 = vector.load %arg2[%c0, %c0_0] : memref<256x128xbf16, #tpu.memory_space<vmem>>, vector<256x128xbf16>
    %c0_1 = arith.constant 0 : index
    %c0_2 = arith.constant 0 : index
    %1 = vector.load %arg3[%c0_1, %c0_2] : memref<128x128xbf16, #tpu.memory_space<vmem>>, vector<128x128xbf16>
    %cst = arith.constant dense<0.000000e+00> : vector<256x128xf32>
    %2 = tpu.matmul %0, %1, %cst {dimension_numbers = #tpu.dot_dimension_numbers<[1], [0], [0], [1], [0, 0, 1, 1], [], []>} : vector<256x128xbf16>, vector<128x128xbf16>, vector<256x128xf32> -> vector<256x128xf32>
    %c0_3 = arith.constant 0 : index
    %c0_4 = arith.constant 0 : index
    %3 = vector.load %arg4[%c0_3, %c0_4] : memref<1x128xf32, #tpu.memory_space<vmem>>, vector<1x128xf32>
    %4 = vector.broadcast %3 : vector<1x128xf32> to vector<256x128xf32>
    %5 = arith.mulf %2, %4 : vector<256x128xf32>
    %c0_5 = arith.constant 0 : index
    %c0_6 = arith.constant 0 : index
    %6 = vector.load %arg5[%c0_5, %c0_6] : memref<1x128xf32, #tpu.memory_space<vmem>>, vector<1x128xf32>
    %7 = vector.broadcast %6 : vector<1x128xf32> to vector<256x128xf32>
    %8 = arith.addf %5, %7 : vector<256x128xf32>
    %cst_7 = arith.constant 0.000000e+00 : f32
    %9 = vector.broadcast %cst_7 : f32 to vector<256x128xf32>
    %10 = arith.maximumf %8, %9 : vector<256x128xf32>
    %11 = arith.truncf %10 : vector<256x128xf32> to vector<256x128xbf16>
    %c0_8 = arith.constant 0 : index
    %c0_9 = arith.constant 0 : index
    %12 = vector.load %arg6[%c0_8, %c0_9] : memref<256x128xbf16, #tpu.memory_space<vmem>>, vector<256x128xbf16>
    tpu.vector_store %arg6[%c0_8, %c0_9], %11 {strides = array<i32>} : memref<256x128xbf16, #tpu.memory_space<vmem>>, vector<256x128xbf16>,
    return
  }
  func.func @transform_0(%arg0: i32, %arg1: i32) -> (i32, i32) {
    %c0_i32 = arith.constant 0 : i32
    %c0_i32_0 = arith.constant 0 : i32
    return %arg0, %c0_i32 : i32, i32
  }
  func.func @transform_1(%arg0: i32, %arg1: i32) -> (i32, i32) {
    %c0_i32 = arith.constant 0 : i32
    %c0_i32_0 = arith.constant 0 : i32
    return %c0_i32, %arg1 : i32, i32
  }
  func.func @transform_2(%arg0: i32, %arg1: i32) -> (i32, i32) {
    %c0_i32 = arith.constant 0 : i32
    %c0_i32_0 = arith.constant 0 : i32
    return %c0_i32, %arg1 : i32, i32
  }
  func.func @transform_3(%arg0: i32, %arg1: i32) -> (i32, i32) {
    %c0_i32 = arith.constant 0 : i32
    %c0_i32_0 = arith.constant 0 : i32
    return %c0_i32, %arg1 : i32, i32
  }
  func.func @transform_4(%arg0: i32, %arg1: i32) -> (i32, i32) {
    %c0_i32 = arith.constant 0 : i32
    return %arg0, %arg1 : i32, i32
  }
}

</mosaic_0001>

<llo_original>
// kernel: tpu_custom_call.1
$region0: #{tpu_custom_call.1}
  #allocation0 [shape = 'u32[]', space=smem, size = 0x4, offset = 0x4, fixed_abs, tag = 'smem constant byte address 0x4 - core index']
  #allocation1 [shape = 'u32[72,128]{1,0:T(1,128)}', space=vmem, size = 0x9000, scoped, tag = 'internal scratch']
  %s0 = inlined_call_operand.hbm [shape: bf16[512,128], index: 0, kind: input, shape index: {}]
  %s1 = inlined_call_operand.hbm [shape: bf16[128,128], index: 1, kind: input, shape index: {}]
  %s2 = inlined_call_operand.vmem [shape: f32[1,128], index: 2, kind: input, shape index: {}]
  %s3 = inlined_call_operand.vmem [shape: f32[1,128], index: 3, kind: input, shape index: {}]
  %s4 = inlined_call_operand.hbm [shape: bf16[512,128], index: 4, kind: output, shape index: {}]
  %s5 = sld [smem:[#allocation0]]
  $region57: #{tpu_custom_call.1} parent=0
    _
  %s7 = ssub.s32 1, %s5
  %s8 = scalar_select 0, %s7, %s5
  $region1: #{tpu_custom_call.1} parent=0
    #allocation2 [shape = 'u8[131072]{0}', space=vmem, size = 0x20000, scoped, tag = 'input window, operand 0']
    #allocation3 [shape = 's32[2]{0}', space=sflag, size = 0x8, scoped, tag = 'scoped memory for tpu_custom_call.1']
    #allocation4 [shape = 's32[2]{0}', space=sflag, size = 0x8, scoped, tag = 'scoped memory for tpu_custom_call.1']
    #allocation5 [shape = 'u8[32768]{0}', space=vmem, size = 0x8000, scoped, tag = 'input window, operand 1, single buffered']
    #allocation6 [shape = 's32[1]{0}', space=sflag, size = 0x4, scoped, tag = 'scoped memory for tpu_custom_call.1']
    #allocation7 [shape = 'u8[131072]{0}', space=vmem, size = 0x20000, scoped, tag = 'output window, operand 0']
    %9 = vsyncpa [#allocation3], 0
    %s10 = scalar_lea.sflag [#allocation3], 1
    %11 = vsyncpa %s10, 0
    %12 = vsyncpa [#allocation6], 0
    %13 = vsyncpa [#allocation4], 0
    %s14 = scalar_lea.sflag [#allocation4], 1
    %15 = vsyncpa %s14, 0
    loop: start=0, step=1, limit=4
    $region2: #{tpu_custom_call.1} parent=1 // loop_pre_header
      _
    $region3: #{tpu_custom_call.1} parent=1 // loop_header
      %s17 = sphi 0, %s21
      %p18 = scmp.ge.s32.totalorder %s17, 4
      %s24 = sphi 0, %s36
      %s25 = sphi 0, %s32
      %s26 = sphi 0, %s24
      %s27 = sphi 0, %s25
      %s28 = sphi 0, %s26
      %s29 = sphi 0, %s27
      %s39 = sphi 0, %s41
      %s42 = sphi 0, %s39
      %s43 = sphi 0, %s42
      %s59 = sphi 0, %s43
      %s65 = sphi 0, %s67
      %s68 = sphi 0, %s65
      %s69 = sphi 0, %s68
      %s85 = sphi 0, %s69
      %s91 = sphi 0, %s93
      %s94 = sphi 0, %s91
      %s95 = sphi 0, %s94
      %s111 = sphi 0, %s95
      %s117 = sphi 0, %s119
      %s120 = sphi 0, %s117
      %s121 = sphi 0, %s120
      %s137 = sphi 0, %s121
      %s145 = sphi 0, %s147
      %s148 = sphi 0, %s145
      %s149 = sphi 0, %s148
      %s165 = sphi 0, %s149
    $region4: #{tpu_custom_call.1} parent=1 // loop_header_branch
      %20 = sbr.rel (%p18) target = $region8
    $region5: #{tpu_custom_call.1} parent=1 // loop_body
      %s22 = ssub.s32 %s17, 1
      %s23 = ssub.s32 %s17, 2
      %s30 = sadd.s32 1, %s25
      %p31 = scmp.ge.s32.totalorder %s30, 1
      %s32 = scalar_select %p31, 0, %s30
      %s33 = sadd.s32 1, %s24
      %s34 = scalar_select %p31, %s33, %s24
      %p35 = scmp.ge.s32.totalorder %s34, 2
      %s36 = scalar_select %p35, 0, %s34
      %s37 = ssub.s32 %s24, %s36
      %p38 = scmp.eq.s32.totalorder %s37, 0
      %s40 = sadd.s32 %s39, 1
      %s41 = scalar_select %p38, %s39, %s40
      %p44 = pneg %p38
      %p45 = scmp.eq.s32.totalorder %s17, 1
      %p46 = por %p44, %p45
      %p47 = scmp.ne.s32.totalorder %s39, %s42
      %p48 = scmp.eq.s32.totalorder %s17, 0
      %p49 = por %p47, %p48
      %p50 = scmp.ne.s32.totalorder %s39, %s42
      %p51 = scmp.eq.s32.totalorder %s22, 1
      %p52 = por %p50, %p51
      %p53 = scmp.ne.s32.totalorder %s42, %s43
      %p54 = scmp.eq.s32.totalorder %s22, 0
      %p55 = por %p53, %p54
      %p56 = scmp.ne.s32.totalorder %s42, %s43
      %p57 = scmp.eq.s32.totalorder %s23, 1
      %p58 = por %p56, %p57
      %p60 = scmp.ne.s32.totalorder %s43, %s59
      %p61 = scmp.eq.s32.totalorder %s23, 0
      %p62 = por %p60, %p61
      %s63 = ssub.s32 %s25, %s32
      %p64 = scmp.eq.s32.totalorder %s63, 0
      %s66 = sadd.s32 %s65, 1
      %s67 = scalar_select %p64, %s65, %s66
      %p70 = pneg %p64
      %p71 = scmp.eq.s32.totalorder %s17, 1
      %p72 = por %p70, %p71
      %p73 = scmp.ne.s32.totalorder %s65, %s68
      %p74 = scmp.eq.s32.totalorder %s17, 0
      %p75 = por %p73, %p74
      %p76 = scmp.ne.s32.totalorder %s65, %s68
      %p77 = scmp.eq.s32.totalorder %s22, 1
      %p78 = por %p76, %p77
      %p79 = scmp.ne.s32.totalorder %s68, %s69
      %p80 = scmp.eq.s32.totalorder %s22, 0
      %p81 = por %p79, %p80
      %p82 = scmp.ne.s32.totalorder %s68, %s69
      %p83 = scmp.eq.s32.totalorder %s23, 1
      %p84 = por %p82, %p83
      %p86 = scmp.ne.s32.totalorder %s69, %s85
      %p87 = scmp.eq.s32.totalorder %s23, 0
      %p88 = por %p86, %p87
      %s89 = ssub.s32 %s25, %s32
      %p90 = scmp.eq.s32.totalorder %s89, 0
      %s92 = sadd.s32 %s91, 1
      %s93 = scalar_select %p90, %s91, %s92
      %p96 = pneg %p90
      %p97 = scmp.eq.s32.totalorder %s17, 1
      %p98 = por %p96, %p97
      %p99 = scmp.ne.s32.totalorder %s91, %s94
      %p100 = scmp.eq.s32.totalorder %s17, 0
      %p101 = por %p99, %p100
      %p102 = scmp.ne.s32.totalorder %s91, %s94
      %p103 = scmp.eq.s32.totalorder %s22, 1
      %p104 = por %p102, %p103
      %p105 = scmp.ne.s32.totalorder %s94, %s95
      %p106 = scmp.eq.s32.totalorder %s22, 0
      %p107 = por %p105, %p106
      %p108 = scmp.ne.s32.totalorder %s94, %s95
      %p109 = scmp.eq.s32.totalorder %s23, 1
      %p110 = por %p108, %p109
      %p112 = scmp.ne.s32.totalorder %s95, %s111
      %p113 = scmp.eq.s32.totalorder %s23, 0
      %p114 = por %p112, %p113
      %s115 = ssub.s32 %s25, %s32
      %p116 = scmp.eq.s32.totalorder %s115, 0
      %s118 = sadd.s32 %s117, 1
      %s119 = scalar_select %p116, %s117, %s118
      %p122 = pneg %p116
      %p123 = scmp.eq.s32.totalorder %s17, 1
      %p124 = por %p122, %p123
      %p125 = scmp.ne.s32.totalorder %s117, %s120
      %p126 = scmp.eq.s32.totalorder %s17, 0
      %p127 = por %p125, %p126
      %p128 = scmp.ne.s32.totalorder %s117, %s120
      %p129 = scmp.eq.s32.totalorder %s22, 1
      %p130 = por %p128, %p129
      %p131 = scmp.ne.s32.totalorder %s120, %s121
      %p132 = scmp.eq.s32.totalorder %s22, 0
      %p133 = por %p131, %p132
      %p134 = scmp.ne.s32.totalorder %s120, %s121
      %p135 = scmp.eq.s32.totalorder %s23, 1
      %p136 = por %p134, %p135
      %p138 = scmp.ne.s32.totalorder %s121, %s137
      %p139 = scmp.eq.s32.totalorder %s23, 0
      %p140 = por %p138, %p139
      %s141 = ssub.s32 %s24, %s36
      %s142 = ssub.s32 %s25, %s32
      %s143 = sor.u32 %s141, %s142
      %p144 = scmp.eq.s32.totalorder %s143, 0
      %s146 = sadd.s32 %s145, 1
      %s147 = scalar_select %p144, %s145, %s146
      %p150 = pneg %p144
      %p151 = scmp.eq.s32.totalorder %s17, 1
      %p152 = por %p150, %p151
      %p153 = scmp.ne.s32.totalorder %s145, %s148
      %p154 = scmp.eq.s32.totalorder %s17, 0
      %p155 = por %p153, %p154
      %p156 = scmp.ne.s32.totalorder %s145, %s148
      %p157 = scmp.eq.s32.totalorder %s22, 1
      %p158 = por %p156, %p157
      %p159 = scmp.ne.s32.totalorder %s148, %s149
      %p160 = scmp.eq.s32.totalorder %s22, 0
      %p161 = por %p159, %p160
      %p162 = scmp.ne.s32.totalorder %s148, %s149
      %p163 = scmp.eq.s32.totalorder %s23, 1
      %p164 = por %p162, %p163
      %p166 = scmp.ne.s32.totalorder %s149, %s165
      %p167 = scmp.eq.s32.totalorder %s23, 0
      %p168 = por %p166, %p167
      %p169 = scmp.le.s32.totalorder 1, %s17
      %p170 = scmp.lt.s32.totalorder %s17, 3
      %p171 = pnand %p169, %p170
      %p172 = pneg %p171
      // Predicated region
      $region9: #{tpu_custom_call.1} parent=5 // pred_check
        _
      $region10: #{tpu_custom_call.1} parent=5 // pred_check_branch
        %174 = sbr.rel (%p171) target = $region12
      $region11: #{tpu_custom_call.1} parent=5 // pred_region
        %s175 = ssub.s32 %s17, 1
        // Predicated region
        $region13: #{tpu_custom_call.1} parent=11 // pred_check
          %p176 = pneg %p81
        $region14: #{tpu_custom_call.1} parent=11 // pred_check_branch
          %178 = sbr.rel (%p176) target = $region16
        $region15: #{tpu_custom_call.1} parent=11 // pred_region
          %180 = vsyncadd [#allocation6], 0
          %s181 = smul.addr %s27, 4
          %s182 = scalar_lea.hbm %s1, %s181
          %s183 = sshll.u32 %s182, 4
          %s184 = int_to_ptr.hbm [resolvable:$true] %s183
          %s185 = sshll.u32 [#allocation5], 4
          %s186 = int_to_ptr.vmem [resolvable:$true] %s185
          %191 = dma.hbm_to_vmem [thread:$0]  %s184, 1024, %s186, [#allocation6], 64, 64, 4
        $region16: #{tpu_custom_call.1} parent=11 // pred_fallthru
          _
        // Predicated region
        $region17: #{tpu_custom_call.1} parent=11 // pred_check
          %p192 = pneg %p107
        $region18: #{tpu_custom_call.1} parent=11 // pred_check_branch
          %194 = sbr.rel (%p192) target = $region20
        $region19: #{tpu_custom_call.1} parent=11 // pred_region
          %p195 = scmp.lt.s32.totalorder %s27, 0
          %s196 = scalar_select %p195, %s27, 0
          %s197 = scalar_lea.vmem %s2, %s196
        $region20: #{tpu_custom_call.1} parent=11 // pred_fallthru
          _
        // Predicated region
        $region21: #{tpu_custom_call.1} parent=11 // pred_check
          %p198 = pneg %p133
        $region22: #{tpu_custom_call.1} parent=11 // pred_check_branch
          %200 = sbr.rel (%p198) target = $region24
        $region23: #{tpu_custom_call.1} parent=11 // pred_region
          %p201 = scmp.lt.s32.totalorder %s27, 0
          %s202 = scalar_select %p201, %s27, 0
          %s203 = scalar_lea.vmem %s3, %s202
        $region24: #{tpu_custom_call.1} parent=11 // pred_fallthru
          _
      $region12: #{tpu_custom_call.1} parent=5 // pred_fallthru
        _
      %p204 = scmp.lt.s32.totalorder %s17, 2
      // Predicated region
      $region25: #{tpu_custom_call.1} parent=5 // pred_check
        %p205 = pneg %p204
      $region26: #{tpu_custom_call.1} parent=5 // pred_check_branch
        %207 = sbr.rel (%p205) target = $region28
      $region27: #{tpu_custom_call.1} parent=5 // pred_region
        // Predicated region
        $region29: #{tpu_custom_call.1} parent=27 // pred_check
          %p208 = pneg %p49
        $region30: #{tpu_custom_call.1} parent=27 // pred_check_branch
          %210 = sbr.rel (%p208) target = $region32
        $region31: #{tpu_custom_call.1} parent=27 // pred_region
          %s211 = sand.u32 %s39, 1
          %s212 = scalar_lea.sflag [#allocation3], %s211
          %s213 = sand.u32 %s39, 1
          %s214 = smul.addr %s213, 128
          %s215 = scalar_lea.vmem [#allocation2], %s214
          %s216 = smul.u32 32, %s24
          %218 = vsyncadd %s212, 0
          %s219 = smul.addr %s216, 4
          %s220 = scalar_lea.hbm %s0, %s219
          %s221 = sshll.u32 %s220, 4
          %s222 = int_to_ptr.hbm [resolvable:$true] %s221
          %s223 = sshll.u32 %s215, 4
          %s224 = int_to_ptr.vmem [resolvable:$true] %s223
          %229 = dma.hbm_to_vmem [thread:$0]  %s222, 2048, %s224, %s212, 64, 64, 4
        $region32: #{tpu_custom_call.1} parent=27 // pred_fallthru
          _
      $region28: #{tpu_custom_call.1} parent=5 // pred_fallthru
        _
      %p230 = scmp.le.s32.totalorder 1, %s17
      %p231 = scmp.lt.s32.totalorder %s17, 3
      %p232 = pnand %p230, %p231
      %p233 = pneg %p232
      // Predicated region
      $region33: #{tpu_custom_call.1} parent=5 // pred_check
        _
      $region34: #{tpu_custom_call.1} parent=5 // pred_check_branch
        %235 = sbr.rel (%p232) target = $region36
      $region35: #{tpu_custom_call.1} parent=5 // pred_region
        %s236 = ssub.s32 %s17, 1
        %s237 = sand.u32 %s42, 1
        %s238 = scalar_lea.sflag [#allocation3], %s237
        %s239 = sand.u32 %s42, 1
        %s240 = smul.addr %s239, 128
        %s241 = scalar_lea.vmem [#allocation2], %s240
        // Predicated region
        $region37: #{tpu_custom_call.1} parent=35 // pred_check
          %p242 = pneg %p55
        $region38: #{tpu_custom_call.1} parent=35 // pred_check_branch
          %244 = sbr.rel (%p242) target = $region40
        $region39: #{tpu_custom_call.1} parent=35 // pred_region
          %246 = dma.done %s238, 2048
        $region40: #{tpu_custom_call.1} parent=35 // pred_fallthru
          _
        // Predicated region
        $region41: #{tpu_custom_call.1} parent=35 // pred_check
          %p247 = pneg %p81
        $region42: #{tpu_custom_call.1} parent=35 // pred_check_branch
          %249 = sbr.rel (%p247) target = $region44
        $region43: #{tpu_custom_call.1} parent=35 // pred_region
          %251 = dma.done [#allocation6], 1024
        $region44: #{tpu_custom_call.1} parent=35 // pred_fallthru
          _
        %s252 = sand.u32 %s42, 1
        %s253 = scalar_lea.sflag [#allocation3], %s252
        %s254 = sand.u32 %s42, 1
        %s255 = smul.addr %s254, 128
        %s256 = scalar_lea.vmem [#allocation2], %s255
        %p257 = pneg %p55
        %p258 = pneg %p52
        %p259 = pneg %p81
        %p260 = pneg %p78
        %p261 = scmp.lt.s32.totalorder %s27, 0
        %s262 = scalar_select %p261, %s27, 0
        %s263 = scalar_lea.vmem %s2, %s262
        %p264 = pneg %p107
        %p265 = pneg %p104
        %p266 = scmp.lt.s32.totalorder %s27, 0
        %s267 = scalar_select %p266, %s27, 0
        %s268 = scalar_lea.vmem %s3, %s267
        %p269 = pneg %p133
        %p270 = pneg %p130
        %p271 = pneg %p161
        %p272 = pneg %p158
        %s273 = sand.u32 %s148, 1
        %s274 = scalar_lea.sflag [#allocation4], %s273
        %s275 = sand.u32 %s148, 1
        %s276 = smul.addr %s275, 128
        %s277 = scalar_lea.vmem [#allocation7], %s276
        %s278 = smul.u32 32, %s26
        %p279 = scmp.lt.s32.totalorder %s27, 0
        %s280 = scalar_select %p279, %s27, 0
        %s281 = scalar_lea.vmem %s2, %s280
        %p282 = scmp.lt.s32.totalorder %s27, 0
        %s283 = scalar_select %p282, %s27, 0
        %s284 = scalar_lea.vmem %s3, %s283
        %s285 = smul.u32 32, %s26
        %v286 = vld [vmem:[%s241] sm:$0xf]
        %v287 = vld [vmem:[%s241 + $0x4] sm:$0xf]
        %v288 = vld [vmem:[%s241 + $0x8] sm:$0xf]
        %v289 = vld [vmem:[%s241 + $0xc] sm:$0xf]
        %v290 = vld [vmem:[%s241 + $0x10] sm:$0xf]
        %v291 = vld [vmem:[%s241 + $0x14] sm:$0xf]
        %v292 = vld [vmem:[%s241 + $0x18] sm:$0xf]
        %v293 = vld [vmem:[%s241 + $0x1c] sm:$0xf]
        %v294 = vld [vmem:[%s241 + $0x20] sm:$0xf]
        %v295 = vld [vmem:[%s241 + $0x24] sm:$0xf]
        %v296 = vld [vmem:[%s241 + $0x28] sm:$0xf]
        %v297 = vld [vmem:[%s241 + $0x2c] sm:$0xf]
        %v298 = vld [vmem:[%s241 + $0x30] sm:$0xf]
        %v299 = vld [vmem:[%s241 + $0x34] sm:$0xf]
        %v300 = vld [vmem:[%s241 + $0x38] sm:$0xf]
        %v301 = vld [vmem:[%s241 + $0x3c] sm:$0xf]
        %v302 = vld [vmem:[%s241 + $0x40] sm:$0xf]
        %v303 = vld [vmem:[%s241 + $0x44] sm:$0xf]
        %v304 = vld [vmem:[%s241 + $0x48] sm:$0xf]
        %v305 = vld [vmem:[%s241 + $0x4c] sm:$0xf]
        %v306 = vld [vmem:[%s241 + $0x50] sm:$0xf]
        %v307 = vld [vmem:[%s241 + $0x54] sm:$0xf]
        %v308 = vld [vmem:[%s241 + $0x58] sm:$0xf]
        %v309 = vld [vmem:[%s241 + $0x5c] sm:$0xf]
        %v310 = vld [vmem:[%s241 + $0x60] sm:$0xf]
        %v311 = vld [vmem:[%s241 + $0x64] sm:$0xf]
        %v312 = vld [vmem:[%s241 + $0x68] sm:$0xf]
        %v313 = vld [vmem:[%s241 + $0x6c] sm:$0xf]
        %v314 = vld [vmem:[%s241 + $0x70] sm:$0xf]
        %v315 = vld [vmem:[%s241 + $0x74] sm:$0xf]
        %v316 = vld [vmem:[%s241 + $0x78] sm:$0xf]
        %v317 = vld [vmem:[%s241 + $0x7c] sm:$0xf]
        %v318 = vld [vmem:[#allocation5] sm:$0xf]
        %v319 = vld [vmem:[#allocation5 + $0x4] sm:$0xf]
        %v320 = vld [vmem:[#allocation5 + $0x8] sm:$0xf]
        %v321 = vld [vmem:[#allocation5 + $0xc] sm:$0xf]
        %v322 = vld [vmem:[#allocation5 + $0x10] sm:$0xf]
        %v323 = vld [vmem:[#allocation5 + $0x14] sm:$0xf]
        %v324 = vld [vmem:[#allocation5 + $0x18] sm:$0xf]
        %v325 = vld [vmem:[#allocation5 + $0x1c] sm:$0xf]
        %v326 = vld [vmem:[#allocation5 + $0x20] sm:$0xf]
        %v327 = vld [vmem:[#allocation5 + $0x24] sm:$0xf]
        %v328 = vld [vmem:[#allocation5 + $0x28] sm:$0xf]
        %v329 = vld [vmem:[#allocation5 + $0x2c] sm:$0xf]
        %v330 = vld [vmem:[#allocation5 + $0x30] sm:$0xf]
        %v331 = vld [vmem:[#allocation5 + $0x34] sm:$0xf]
        %v332 = vld [vmem:[#allocation5 + $0x38] sm:$0xf]
        %v333 = vld [vmem:[#allocation5 + $0x3c] sm:$0xf]
        %v366 = vunpack.c.l.b16 %v286
        %v367 = vunpack.c.l.b16 %v287
        %v368 = vunpack.c.l.b16 %v288
        %v369 = vunpack.c.l.b16 %v289
        %v370 = vunpack.c.l.b16 %v290
        %v371 = vunpack.c.l.b16 %v291
        %v372 = vunpack.c.l.b16 %v292
        %v373 = vunpack.c.l.b16 %v293
        %v374 = vunpack.c.l.b16 %v294
        %v375 = vunpack.c.l.b16 %v295
        %v376 = vunpack.c.l.b16 %v296
        %v377 = vunpack.c.l.b16 %v297
        %v378 = vunpack.c.l.b16 %v298
        %v379 = vunpack.c.l.b16 %v299
        %v380 = vunpack.c.l.b16 %v300
        %v381 = vunpack.c.l.b16 %v301
        %v382 = vunpack.c.l.b16 %v302
        %v383 = vunpack.c.l.b16 %v303
        %v384 = vunpack.c.l.b16 %v304
        %v385 = vunpack.c.l.b16 %v305
        %v386 = vunpack.c.l.b16 %v306
        %v387 = vunpack.c.l.b16 %v307
        %v388 = vunpack.c.l.b16 %v308
        %v389 = vunpack.c.l.b16 %v309
        %v390 = vunpack.c.l.b16 %v310
        %v391 = vunpack.c.l.b16 %v311
        %v392 = vunpack.c.l.b16 %v312
        %v393 = vunpack.c.l.b16 %v313
        %v394 = vunpack.c.l.b16 %v314
        %v395 = vunpack.c.l.b16 %v315
        %v396 = vunpack.c.l.b16 %v316
        %v397 = vunpack.c.l.b16 %v317
        %v398 = vpack.c.b16 %v367, %v366
        %v399 = vpack.c.b16 %v369, %v368
        %v400 = vpack.c.b16 %v371, %v370
        %v401 = vpack.c.b16 %v373, %v372
        %v402 = vpack.c.b16 %v375, %v374
        %v403 = vpack.c.b16 %v377, %v376
        %v404 = vpack.c.b16 %v379, %v378
        %v405 = vpack.c.b16 %v381, %v380
        %v406 = vpack.c.b16 %v383, %v382
        %v407 = vpack.c.b16 %v385, %v384
        %v408 = vpack.c.b16 %v387, %v386
        %v409 = vpack.c.b16 %v389, %v388
        %v410 = vpack.c.b16 %v391, %v390
        %v411 = vpack.c.b16 %v393, %v392
        %v412 = vpack.c.b16 %v395, %v394
        %v413 = vpack.c.b16 %v397, %v396
        %v446 = vunpack.c.l.b16 %v318
        %v447 = vunpack.c.l.b16 %v319
        %v448 = vunpack.c.l.b16 %v320
        %v449 = vunpack.c.l.b16 %v321
        %v450 = vunpack.c.l.b16 %v322
        %v451 = vunpack.c.l.b16 %v323
        %v452 = vunpack.c.l.b16 %v324
        %v453 = vunpack.c.l.b16 %v325
        %v454 = vunpack.c.l.b16 %v326
        %v455 = vunpack.c.l.b16 %v327
        %v456 = vunpack.c.l.b16 %v328
        %v457 = vunpack.c.l.b16 %v329
        %v458 = vunpack.c.l.b16 %v330
        %v459 = vunpack.c.l.b16 %v331
        %v460 = vunpack.c.l.b16 %v332
        %v461 = vunpack.c.l.b16 %v333
        %v462 = vpack.c.b16 %v447, %v446
        %v463 = vpack.c.b16 %v449, %v448
        %v464 = vpack.c.b16 %v451, %v450
        %v465 = vpack.c.b16 %v453, %v452
        %v466 = vpack.c.b16 %v455, %v454
        %v467 = vpack.c.b16 %v457, %v456
        %v468 = vpack.c.b16 %v459, %v458
        %v469 = vpack.c.b16 %v461, %v460
        %478 = vmatpush.bf16.msra.mxu0 %v469
        %479 = vmatpush.bf16.msra.mxu0 %v468
        %480 = vmatpush.bf16.msra.mxu0 %v467
        %481 = vmatpush.bf16.msra.mxu0 %v466
        %482 = vmatpush.bf16.msra.mxu0 %v465
        %483 = vmatpush.bf16.msra.mxu0 %v464
        %484 = vmatpush.bf16.msra.mxu0 %v463
        %485 = vmatpush.bf16.msra.mxu0 %v462
        %486 = vmatmul.bf16.gmra.mxu0 %v398
        %v487 = vpop.f32.mrf.mxu0
        %v488 = vadd.f32 0.0, %v487
        %v489 = vpop.f32.mrf.mxu0
        %v490 = vadd.f32 0.0, %v489
        %491 = vmatmul.bf16.gmra.mxu0 %v399
        %v492 = vpop.f32.mrf.mxu0
        %v493 = vadd.f32 0.0, %v492
        %v494 = vpop.f32.mrf.mxu0
        %v495 = vadd.f32 0.0, %v494
        %496 = vmatmul.bf16.gmra.mxu0 %v400
        %v497 = vpop.f32.mrf.mxu0
        %v498 = vadd.f32 0.0, %v497
        %v499 = vpop.f32.mrf.mxu0
        %v500 = vadd.f32 0.0, %v499
        %501 = vmatmul.bf16.gmra.mxu0 %v401
        %v502 = vpop.f32.mrf.mxu0
        %v503 = vadd.f32 0.0, %v502
        %v504 = vpop.f32.mrf.mxu0
        %v505 = vadd.f32 0.0, %v504
        %506 = vmatmul.bf16.gmra.mxu0 %v402
        %v507 = vpop.f32.mrf.mxu0
        %v508 = vadd.f32 0.0, %v507
        %v509 = vpop.f32.mrf.mxu0
        %v510 = vadd.f32 0.0, %v509
        %511 = vmatmul.bf16.gmra.mxu0 %v403
        %v512 = vpop.f32.mrf.mxu0
        %v513 = vadd.f32 0.0, %v512
        %v514 = vpop.f32.mrf.mxu0
        %v515 = vadd.f32 0.0, %v514
        %516 = vmatmul.bf16.gmra.mxu0 %v404
        %v517 = vpop.f32.mrf.mxu0
        %v518 = vadd.f32 0.0, %v517
        %v519 = vpop.f32.mrf.mxu0
        %v520 = vadd.f32 0.0, %v519
        %521 = vmatmul.bf16.gmra.mxu0 %v405
        %v522 = vpop.f32.mrf.mxu0
        %v523 = vadd.f32 0.0, %v522
        %v524 = vpop.f32.mrf.mxu0
        %v525 = vadd.f32 0.0, %v524
        %526 = vmatmul.bf16.gmra.mxu0 %v406
        %v527 = vpop.f32.mrf.mxu0
        %v528 = vadd.f32 0.0, %v527
        %v529 = vpop.f32.mrf.mxu0
        %v530 = vadd.f32 0.0, %v529
        %531 = vmatmul.bf16.gmra.mxu0 %v407
        %v532 = vpop.f32.mrf.mxu0
        %v533 = vadd.f32 0.0, %v532
        %v534 = vpop.f32.mrf.mxu0
        %v535 = vadd.f32 0.0, %v534
        %536 = vmatmul.bf16.gmra.mxu0 %v408
        %v537 = vpop.f32.mrf.mxu0
        %v538 = vadd.f32 0.0, %v537
        %v539 = vpop.f32.mrf.mxu0
        %v540 = vadd.f32 0.0, %v539
        %541 = vmatmul.bf16.gmra.mxu0 %v409
        %v542 = vpop.f32.mrf.mxu0
        %v543 = vadd.f32 0.0, %v542
        %v544 = vpop.f32.mrf.mxu0
        %v545 = vadd.f32 0.0, %v544
        %546 = vmatmul.bf16.gmra.mxu0 %v410
        %v547 = vpop.f32.mrf.mxu0
        %v548 = vadd.f32 0.0, %v547
        %v549 = vpop.f32.mrf.mxu0
        %v550 = vadd.f32 0.0, %v549
        %551 = vmatmul.bf16.gmra.mxu0 %v411
        %v552 = vpop.f32.mrf.mxu0
        %v553 = vadd.f32 0.0, %v552
        %v554 = vpop.f32.mrf.mxu0
        %v555 = vadd.f32 0.0, %v554
        %556 = vmatmul.bf16.gmra.mxu0 %v412
        %v557 = vpop.f32.mrf.mxu0
        %v558 = vadd.f32 0.0, %v557
        %v559 = vpop.f32.mrf.mxu0
        %v560 = vadd.f32 0.0, %v559
        %561 = vmatmul.bf16.gmra.mxu0 %v413
        %v562 = vpop.f32.mrf.mxu0
        %v563 = vadd.f32 0.0, %v562
        %v564 = vpop.f32.mrf.mxu0
        %v565 = vadd.f32 0.0, %v564
        %566 = vdwg.mxu0
        %v567 = vld [vmem:[%s281] sm:$0x1]
        %v569 = vperm.slane %v567, 0
        %v571 = vmul.f32 %v488, %v569
        %v572 = vmul.f32 %v490, %v569
        %v573 = vmul.f32 %v493, %v569
        %v574 = vmul.f32 %v495, %v569
        %v575 = vmul.f32 %v498, %v569
        %v576 = vmul.f32 %v500, %v569
        %v577 = vmul.f32 %v503, %v569
        %v578 = vmul.f32 %v505, %v569
        %v579 = vmul.f32 %v508, %v569
        %v580 = vmul.f32 %v510, %v569
        %v581 = vmul.f32 %v513, %v569
        %v582 = vmul.f32 %v515, %v569
        %v583 = vmul.f32 %v518, %v569
        %v584 = vmul.f32 %v520, %v569
        %v585 = vmul.f32 %v523, %v569
        %v586 = vmul.f32 %v525, %v569
        %v587 = vmul.f32 %v528, %v569
        %v588 = vmul.f32 %v530, %v569
        %v589 = vmul.f32 %v533, %v569
        %v590 = vmul.f32 %v535, %v569
        %v591 = vmul.f32 %v538, %v569
        %v592 = vmul.f32 %v540, %v569
        %v593 = vmul.f32 %v543, %v569
        %v594 = vmul.f32 %v545, %v569
        %v595 = vmul.f32 %v548, %v569
        %v596 = vmul.f32 %v550, %v569
        %v597 = vmul.f32 %v553, %v569
        %v598 = vmul.f32 %v555, %v569
        %v599 = vmul.f32 %v558, %v569
        %v600 = vmul.f32 %v560, %v569
        %v601 = vmul.f32 %v563, %v569
        %v602 = vmul.f32 %v565, %v569
        %v603 = vld [vmem:[%s284] sm:$0x1]
        %v605 = vperm.slane %v603, 0
        %v607 = vadd.f32 %v571, %v605
        %v608 = vadd.f32 %v572, %v605
        %v609 = vadd.f32 %v573, %v605
        %v610 = vadd.f32 %v574, %v605
        %v611 = vadd.f32 %v575, %v605
        %v612 = vadd.f32 %v576, %v605
        %v613 = vadd.f32 %v577, %v605
        %v614 = vadd.f32 %v578, %v605
        %v615 = vadd.f32 %v579, %v605
        %v616 = vadd.f32 %v580, %v605
        %v617 = vadd.f32 %v581, %v605
        %v618 = vadd.f32 %v582, %v605
        %v619 = vadd.f32 %v583, %v605
        %v620 = vadd.f32 %v584, %v605
        %v621 = vadd.f32 %v585, %v605
        %v622 = vadd.f32 %v586, %v605
        %v623 = vadd.f32 %v587, %v605
        %v624 = vadd.f32 %v588, %v605
        %v625 = vadd.f32 %v589, %v605
        %v626 = vadd.f32 %v590, %v605
        %v627 = vadd.f32 %v591, %v605
        %v628 = vadd.f32 %v592, %v605
        %v629 = vadd.f32 %v593, %v605
        %v630 = vadd.f32 %v594, %v605
        %v631 = vadd.f32 %v595, %v605
        %v632 = vadd.f32 %v596, %v605
        %v633 = vadd.f32 %v597, %v605
        %v634 = vadd.f32 %v598, %v605
        %v635 = vadd.f32 %v599, %v605
        %v636 = vadd.f32 %v600, %v605
        %v637 = vadd.f32 %v601, %v605
        %v638 = vadd.f32 %v602, %v605
        %v639 = vmax.f32 %v607, 0.0
        %v640 = vmax.f32 %v608, 0.0
        %v641 = vmax.f32 %v609, 0.0
        %v642 = vmax.f32 %v610, 0.0
        %v643 = vmax.f32 %v611, 0.0
        %v644 = vmax.f32 %v612, 0.0
        %v645 = vmax.f32 %v613, 0.0
        %v646 = vmax.f32 %v614, 0.0
        %v647 = vmax.f32 %v615, 0.0
        %v648 = vmax.f32 %v616, 0.0
        %v649 = vmax.f32 %v617, 0.0
        %v650 = vmax.f32 %v618, 0.0
        %v651 = vmax.f32 %v619, 0.0
        %v652 = vmax.f32 %v620, 0.0
        %v653 = vmax.f32 %v621, 0.0
        %v654 = vmax.f32 %v622, 0.0
        %v655 = vmax.f32 %v623, 0.0
        %v656 = vmax.f32 %v624, 0.0
        %v657 = vmax.f32 %v625, 0.0
        %v658 = vmax.f32 %v626, 0.0
        %v659 = vmax.f32 %v627, 0.0
        %v660 = vmax.f32 %v628, 0.0
        %v661 = vmax.f32 %v629, 0.0
        %v662 = vmax.f32 %v630, 0.0
        %v663 = vmax.f32 %v631, 0.0
        %v664 = vmax.f32 %v632, 0.0
        %v665 = vmax.f32 %v633, 0.0
        %v666 = vmax.f32 %v634, 0.0
        %v667 = vmax.f32 %v635, 0.0
        %v668 = vmax.f32 %v636, 0.0
        %v669 = vmax.f32 %v637, 0.0
        %v670 = vmax.f32 %v638, 0.0
        %v671 = vpack.c.bf16 %v639, %v639
        %v672 = vpack.c.bf16 %v640, %v640
        %v673 = vpack.c.bf16 %v641, %v641
        %v674 = vpack.c.bf16 %v642, %v642
        %v675 = vpack.c.bf16 %v643, %v643
        %v676 = vpack.c.bf16 %v644, %v644
        %v677 = vpack.c.bf16 %v645, %v645
        %v678 = vpack.c.bf16 %v646, %v646
        %v679 = vpack.c.bf16 %v647, %v647
        %v680 = vpack.c.bf16 %v648, %v648
        %v681 = vpack.c.bf16 %v649, %v649
        %v682 = vpack.c.bf16 %v650, %v650
        %v683 = vpack.c.bf16 %v651, %v651
        %v684 = vpack.c.bf16 %v652, %v652
        %v685 = vpack.c.bf16 %v653, %v653
        %v686 = vpack.c.bf16 %v654, %v654
        %v687 = vpack.c.bf16 %v655, %v655
        %v688 = vpack.c.bf16 %v656, %v656
        %v689 = vpack.c.bf16 %v657, %v657
        %v690 = vpack.c.bf16 %v658, %v658
        %v691 = vpack.c.bf16 %v659, %v659
        %v692 = vpack.c.bf16 %v660, %v660
        %v693 = vpack.c.bf16 %v661, %v661
        %v694 = vpack.c.bf16 %v662, %v662
        %v695 = vpack.c.bf16 %v663, %v663
        %v696 = vpack.c.bf16 %v664, %v664
        %v697 = vpack.c.bf16 %v665, %v665
        %v698 = vpack.c.bf16 %v666, %v666
        %v699 = vpack.c.bf16 %v667, %v667
        %v700 = vpack.c.bf16 %v668, %v668
        %v701 = vpack.c.bf16 %v669, %v669
        %v702 = vpack.c.bf16 %v670, %v670
        %703 = vst [vmem:[%s277] sm:$0xf] %v671
        %704 = vst [vmem:[%s277 + $0x4] sm:$0xf] %v672
        %705 = vst [vmem:[%s277 + $0x8] sm:$0xf] %v673
        %706 = vst [vmem:[%s277 + $0xc] sm:$0xf] %v674
        %707 = vst [vmem:[%s277 + $0x10] sm:$0xf] %v675
        %708 = vst [vmem:[%s277 + $0x14] sm:$0xf] %v676
        %709 = vst [vmem:[%s277 + $0x18] sm:$0xf] %v677
        %710 = vst [vmem:[%s277 + $0x1c] sm:$0xf] %v678
        %711 = vst [vmem:[%s277 + $0x20] sm:$0xf] %v679
        %712 = vst [vmem:[%s277 + $0x24] sm:$0xf] %v680
        %713 = vst [vmem:[%s277 + $0x28] sm:$0xf] %v681
        %714 = vst [vmem:[%s277 + $0x2c] sm:$0xf] %v682
        %715 = vst [vmem:[%s277 + $0x30] sm:$0xf] %v683
        %716 = vst [vmem:[%s277 + $0x34] sm:$0xf] %v684
        %717 = vst [vmem:[%s277 + $0x38] sm:$0xf] %v685
        %718 = vst [vmem:[%s277 + $0x3c] sm:$0xf] %v686
        %719 = vst [vmem:[%s277 + $0x40] sm:$0xf] %v687
        %720 = vst [vmem:[%s277 + $0x44] sm:$0xf] %v688
        %721 = vst [vmem:[%s277 + $0x48] sm:$0xf] %v689
        %722 = vst [vmem:[%s277 + $0x4c] sm:$0xf] %v690
        %723 = vst [vmem:[%s277 + $0x50] sm:$0xf] %v691
        %724 = vst [vmem:[%s277 + $0x54] sm:$0xf] %v692
        %725 = vst [vmem:[%s277 + $0x58] sm:$0xf] %v693
        %726 = vst [vmem:[%s277 + $0x5c] sm:$0xf] %v694
        %727 = vst [vmem:[%s277 + $0x60] sm:$0xf] %v695
        %728 = vst [vmem:[%s277 + $0x64] sm:$0xf] %v696
        %729 = vst [vmem:[%s277 + $0x68] sm:$0xf] %v697
        %730 = vst [vmem:[%s277 + $0x6c] sm:$0xf] %v698
        %731 = vst [vmem:[%s277 + $0x70] sm:$0xf] %v699
        %732 = vst [vmem:[%s277 + $0x74] sm:$0xf] %v700
        %733 = vst [vmem:[%s277 + $0x78] sm:$0xf] %v701
        %734 = vst [vmem:[%s277 + $0x7c] sm:$0xf] %v702
        %s735 = sand.u32 %s148, 1
        %s736 = scalar_lea.sflag [#allocation4], %s735
        %s737 = sand.u32 %s148, 1
        %s738 = smul.addr %s737, 128
        %s739 = scalar_lea.vmem [#allocation7], %s738
        // Predicated region
        $region45: #{tpu_custom_call.1} parent=35 // pred_check
          %p740 = pneg %p158
        $region46: #{tpu_custom_call.1} parent=35 // pred_check_branch
          %742 = sbr.rel (%p740) target = $region48
        $region47: #{tpu_custom_call.1} parent=35 // pred_region
          %s743 = smul.u32 32, %s26
          %745 = vsyncadd %s736, 0
          %s746 = sadd.s32 %s27, %s743
          %s747 = smul.addr %s746, 4
          %s748 = scalar_lea.hbm %s4, %s747
          %s749 = sshll.u32 %s739, 4
          %s750 = int_to_ptr.vmem [resolvable:$true] %s749
          %s751 = sshll.u32 %s748, 4
          %s752 = int_to_ptr.hbm [resolvable:$true] %s751
          %757 = dma.vmem_to_hbm [thread:$0]  %s750, 2048, %s752, %s736, 64, 64, 4
        $region48: #{tpu_custom_call.1} parent=35 // pred_fallthru
          _
      $region36: #{tpu_custom_call.1} parent=5 // pred_fallthru
        _
      %p758 = scmp.le.s32.totalorder 2, %s17
      // Predicated region
      $region49: #{tpu_custom_call.1} parent=5 // pred_check
        %p759 = pneg %p758
      $region50: #{tpu_custom_call.1} parent=5 // pred_check_branch
        %761 = sbr.rel (%p759) target = $region52
      $region51: #{tpu_custom_call.1} parent=5 // pred_region
        %s762 = ssub.s32 %s17, 2
        // Predicated region
        $region53: #{tpu_custom_call.1} parent=51 // pred_check
          %p763 = pneg %p164
        $region54: #{tpu_custom_call.1} parent=51 // pred_check_branch
          %765 = sbr.rel (%p763) target = $region56
        $region55: #{tpu_custom_call.1} parent=51 // pred_region
          %s766 = sand.u32 %s149, 1
          %s767 = scalar_lea.sflag [#allocation4], %s766
          %s768 = sand.u32 %s149, 1
          %s769 = smul.addr %s768, 128
          %s770 = scalar_lea.vmem [#allocation7], %s769
          %772 = dma.done %s767, 2048
        $region56: #{tpu_custom_call.1} parent=51 // pred_fallthru
          _
      $region52: #{tpu_custom_call.1} parent=5 // pred_fallthru
        _
    $region6: #{tpu_custom_call.1} parent=1 // loop_footer
      %s21 = sadd.s32 1, %s17
    $region7: #{tpu_custom_call.1} parent=1 // loop_footer_branch
      %16 = sbr.rel target = $region3
    $region8: #{tpu_custom_call.1} parent=1 // loop_exit
      _
    %773 = vsyncpa [#allocation3], 1
    %s774 = scalar_lea.sflag [#allocation3], 1
    %775 = vsyncpa %s774, 1
    %776 = vsyncpa [#allocation6], 1
    %777 = vsyncpa [#allocation4], 1
    %s778 = scalar_lea.sflag [#allocation4], 1
    %779 = vsyncpa %s778, 1

</llo_original>
